<compile_context>
chip_gen: v5e
topology: v5e:2x2
jax: 0.10.0
libtpu: 0.0.40
codegen_flags: <defaults>
</compile_context>

<pallas_src>
import math

import jax
import jax.numpy as jnp
from jax import lax
from jax.experimental import pallas as pl
from jax.experimental.pallas import tpu as pltpu


# ----------------------------------------------------------------------------
# Fused kernel: one batch element per grid step (grid axis is "parallel").
# ----------------------------------------------------------------------------
def _residual_self_attention_kernel(x_ref, w_qkv_ref, b_qkv_ref,
                                    w_o_ref, b_o_ref, o_ref):
    x = x_ref[...]                                   # (L, D) fp32 in VMEM
    L, D = x.shape

    # Fused Q/K/V projection: one (L, D) @ (D, 3D) MXU matmul.
    # bf16 operands (weights pre-cast at init), fp32 accumulation; bias in fp32.
    qkv = (jnp.dot(x.astype(jnp.bfloat16), w_qkv_ref[...],
                   preferred_element_type=jnp.float32)
           + b_qkv_ref[...])                         # (L, 3D) fp32
    # NOTE: 1/sqrt(D) is already folded into the q columns of w_qkv / b_qkv.
    q = qkv[:, 0 * D:1 * D]
    k = qkv[:, 1 * D:2 * D]
    v = qkv[:, 2 * D:3 * D]

    # scores = q @ k^T by contracting the last dims directly (no K transpose).
    scores = lax.dot_general(q.astype(jnp.bfloat16), k.astype(jnp.bfloat16),
                             dimension_numbers=(((1,), (1,)), ((), ())),
                             preferred_element_type=jnp.float32)   # (L, L) fp32

    # Softmax in fp32 (VPU max/exp + EUP reciprocal).
    scores = scores - jnp.max(scores, axis=-1, keepdims=True)
    p = jnp.exp(scores)
    attn = p * pl.reciprocal(jnp.sum(p, axis=-1, keepdims=True), approx=True)

    weighted = jnp.dot(attn.astype(jnp.bfloat16), v.astype(jnp.bfloat16),
                       preferred_element_type=jnp.float32)         # (L, D) fp32

    # Residual connection (fp32), then output linear (bf16 MXU) + ReLU (fp32).
    resid = weighted + x
    out = (jnp.dot(resid.astype(jnp.bfloat16), w_o_ref[...],
                   preferred_element_type=jnp.float32)
           + b_o_ref[...])                           # (L, Do) fp32
    o_ref[...] = jnp.maximum(out, 0.0).astype(o_ref.dtype)


def residual_self_attention(x, w_qkv, b_qkv, w_o, b_o):
    """x: (B, L, D) fp32. w_qkv: (D, 3D) bf16, b_qkv: (1, 3D) fp32,
    w_o: (D, Do) bf16, b_o: (1, Do) fp32."""
    B, L, D = x.shape
    Do = w_o.shape[1]
    return pl.pallas_call(
        _residual_self_attention_kernel,
        out_shape=jax.ShapeDtypeStruct((B, L, Do), jnp.float32),
        grid=(B,),
        in_specs=[
            # One batch element per step; batch dim squeezed out of the kernel Ref.
            pl.BlockSpec((pl.Squeezed(), L, D), lambda b: (b, 0, 0)),
            # Weights/biases: same block every step (no re-DMA across the grid).
            pl.BlockSpec((D, 3 * D), lambda b: (0, 0)),
            pl.BlockSpec((1, 3 * D), lambda b: (0, 0)),
            pl.BlockSpec((D, Do), lambda b: (0, 0)),
            pl.BlockSpec((1, Do), lambda b: (0, 0)),
        ],
        out_specs=pl.BlockSpec((pl.Squeezed(), L, Do), lambda b: (b, 0, 0)),
        compiler_params=pltpu.CompilerParams(
            dimension_semantics=("parallel",)),
    )(x, w_qkv, b_qkv, w_o, b_o)


# ----------------------------------------------------------------------------
# Parameter init (PyTorch nn.Linear default) + pure-JAX fp32 reference.
# ----------------------------------------------------------------------------
def init_linear(key, in_dim, out_dim):
    # nn.Linear default: U(-1/sqrt(in), 1/sqrt(in)); stored pre-transposed (in, out).
    kw, kb = jax.random.split(key)
    bound = 1.0 / math.sqrt(in_dim)
    w = jax.random.uniform(kw, (in_dim, out_dim), jnp.float32, -bound, bound)
    b = jax.random.uniform(kb, (1, out_dim), jnp.float32, -bound, bound)
    return w, b


def init_residual_self_attention(key, input_dim, output_dim):
    kq, kk, kv, ko = jax.random.split(key, 4)
    wq, bq = init_linear(kq, input_dim, input_dim)
    wk, bk = init_linear(kk, input_dim, input_dim)
    wv, bv = init_linear(kv, input_dim, input_dim)
    wo, bo = init_linear(ko, input_dim, output_dim)

    scale = 1.0 / math.sqrt(float(input_dim))
    # Init-time fold of the attention scale into the q projection (exact fp32
    # fold before the bf16 cast); removes the per-tile VPU multiply in-kernel.
    w_qkv = jnp.concatenate([wq * scale, wk, wv], axis=1)     # (D, 3D) fp32
    b_qkv = jnp.concatenate([bq * scale, bk, bv], axis=1)     # (1, 3D) fp32

    fused = (w_qkv.astype(jnp.bfloat16),   # MXU weight operands pre-cast to bf16
             b_qkv,                        # biases stay fp32 (VPU add)
             wo.astype(jnp.bfloat16),
             bo)
    unfused = (wq, bq, wk, bk, wv, bv, wo, bo)
    return fused, unfused


def residual_self_attention_ref(x, wq, bq, wk, bk, wv, bv, wo, bo):
    scale = 1.0 / math.sqrt(x.shape[-1])
    q = x @ wq + bq
    k = x @ wk + bk
    v = x @ wv + bv
    scores = jnp.einsum('bqd,bkd->bqk', q, k) * scale
    attn = jax.nn.softmax(scores, axis=-1)
    weighted = jnp.einsum('bqk,bkd->bqd', attn, v)
    return jnp.maximum((weighted + x) @ wo + bo, 0.0)


if __name__ == "__main__":
    B, L, D, OUT = 2, 8, 32, 32   # batch, seq, input_dim, output_dim

    root = jax.random.PRNGKey(0)
    kx, kp = jax.random.split(root)
    x = jax.random.normal(kx, (B, L, D), dtype=jnp.float32)
    (w_qkv, b_qkv, w_o, b_o), unfused = init_residual_self_attention(kp, D, OUT)

    y = jax.jit(residual_self_attention)(x, w_qkv, b_qkv, w_o, b_o)
    jax.block_until_ready(y)
    assert y.shape == (B, L, OUT), y.shape

    # fp32 reference; kernel uses bf16 MXU operands (fp32 accumulate), so allow
    # a slightly looser tolerance than a pure-fp32 kernel would need.
    y_ref = residual_self_attention_ref(x, *unfused)
    max_err = float(jnp.max(jnp.abs(y - y_ref)))
    assert jnp.allclose(y, y_ref, atol=2e-2, rtol=2e-2), max_err

    print("KERNEL_OK")
</pallas_src>

<mosaic_0001>
module attributes {stable_mosaic.version = 11 : i64} {
  func.func @_residual_self_attention_kernel(%arg0: i32, %arg1: memref<1x8x32xf32, #tpu.memory_space<vmem>>, %arg2: memref<32x96xbf16, #tpu.memory_space<vmem>>, %arg3: memref<1x96xf32, #tpu.memory_space<vmem>>, %arg4: memref<32x32xbf16, #tpu.memory_space<vmem>>, %arg5: memref<1x32xf32, #tpu.memory_space<vmem>>, %arg6: memref<1x8x32xf32, #tpu.memory_space<vmem>>) attributes {dimension_semantics = [#tpu.dimension_semantics<parallel>], iteration_bounds = array<i64: 2>, scalar_prefetch = 0 : i64, scratch_operands = 0 : i64, tpu.core_type = #tpu.core_type<tc>, window_params = [{transform_indices = @transform_0, window_bounds = array<i64: 1, 8, 32>}, {pipeline_mode = #tpu.pipeline_mode<synchronous>, transform_indices = @transform_1, window_bounds = array<i64: 32, 96>}, {pipeline_mode = #tpu.pipeline_mode<synchronous>, transform_indices = @transform_2, window_bounds = array<i64: 1, 96>}, {pipeline_mode = #tpu.pipeline_mode<synchronous>, transform_indices = @transform_3, window_bounds = array<i64: 32, 32>}, {pipeline_mode = #tpu.pipeline_mode<synchronous>, transform_indices = @transform_4, window_bounds = array<i64: 1, 32>}, {transform_indices = @transform_5, window_bounds = array<i64: 1, 8, 32>}]} {
    %c0 = arith.constant 0 : index
    %c0_0 = arith.constant 0 : index
    %c0_1 = arith.constant 0 : index
    %0 = vector.load %arg1[%c0, %c0_0, %c0_1] : memref<1x8x32xf32, #tpu.memory_space<vmem>>, vector<1x8x32xf32>
    %1 = vector.shape_cast %0 : vector<1x8x32xf32> to vector<8x32xf32>
    %2 = arith.truncf %1 : vector<8x32xf32> to vector<8x32xbf16>
    %c0_2 = arith.constant 0 : index
    %c0_3 = arith.constant 0 : index
    %3 = vector.load %arg2[%c0_2, %c0_3] : memref<32x96xbf16, #tpu.memory_space<vmem>>, vector<32x96xbf16>
    %cst = arith.constant dense<0.000000e+00> : vector<8x96xf32>
    %4 = tpu.matmul %2, %3, %cst {dimension_numbers = #tpu.dot_dimension_numbers<[1], [0], [0], [1], [0, 0, 1, 1], [], []>} : vector<8x32xbf16>, vector<32x96xbf16>, vector<8x96xf32> -> vector<8x96xf32>
    %c0_4 = arith.constant 0 : index
    %c0_5 = arith.constant 0 : index
    %5 = vector.load %arg3[%c0_4, %c0_5] : memref<1x96xf32, #tpu.memory_space<vmem>>, vector<1x96xf32>
    %6 = vector.broadcast %5 : vector<1x96xf32> to vector<8x96xf32>
    %7 = arith.addf %4, %6 : vector<8x96xf32>
    %8 = vector.extract_strided_slice %7 {offsets = [0, 0], sizes = [8, 32], strides = [1, 1]} : vector<8x96xf32> to vector<8x32xf32>
    %9 = vector.extract_strided_slice %7 {offsets = [0, 32], sizes = [8, 32], strides = [1, 1]} : vector<8x96xf32> to vector<8x32xf32>
    %10 = vector.extract_strided_slice %7 {offsets = [0, 64], sizes = [8, 32], strides = [1, 1]} : vector<8x96xf32> to vector<8x32xf32>
    %11 = arith.truncf %8 : vector<8x32xf32> to vector<8x32xbf16>
    %12 = arith.truncf %9 : vector<8x32xf32> to vector<8x32xbf16>
    %cst_6 = arith.constant dense<0.000000e+00> : vector<8x8xf32>
    %13 = tpu.matmul %11, %12, %cst_6 {dimension_numbers = #tpu.dot_dimension_numbers<[1], [1], [0], [0], [0, 0, 1, 0], [], []>} : vector<8x32xbf16>, vector<8x32xbf16>, vector<8x8xf32> -> vector<8x8xf32>
    %cst_7 = arith.constant dense<0xFF800000> : vector<8xf32>
    %14 = vector.multi_reduction <maximumf>, %13, %cst_7 [1] : vector<8x8xf32> to vector<8xf32>
    %15 = vector.shape_cast %14 : vector<8xf32> to vector<8x1xf32>
    %16 = vector.broadcast %15 : vector<8x1xf32> to vector<8x8xf32>
    %17 = arith.subf %13, %16 : vector<8x8xf32>
    %18 = math.exp %17 : vector<8x8xf32>
    %cst_8 = arith.constant dense<0.000000e+00> : vector<8xf32>
    %19 = vector.multi_reduction <add>, %18, %cst_8 [1] : vector<8x8xf32> to vector<8xf32>
    %20 = vector.shape_cast %19 : vector<8xf32> to vector<8x1xf32>
    %21 = tpu.reciprocal %20 {approx = true} : vector<8x1xf32> -> vector<8x1xf32>
    %22 = vector.broadcast %21 : vector<8x1xf32> to vector<8x8xf32>
    %23 = arith.mulf %18, %22 : vector<8x8xf32>
    %24 = arith.truncf %23 : vector<8x8xf32> to vector<8x8xbf16>
    %25 = arith.truncf %10 : vector<8x32xf32> to vector<8x32xbf16>
    %cst_9 = arith.constant dense<0.000000e+00> : vector<8x32xf32>
    %26 = tpu.matmul %24, %25, %cst_9 {dimension_numbers = #tpu.dot_dimension_numbers<[1], [0], [0], [1], [0, 0, 1, 1], [], []>} : vector<8x8xbf16>, vector<8x32xbf16>, vector<8x32xf32> -> vector<8x32xf32>
    %27 = arith.addf %26, %1 : vector<8x32xf32>
    %28 = arith.truncf %27 : vector<8x32xf32> to vector<8x32xbf16>
    %c0_10 = arith.constant 0 : index
    %c0_11 = arith.constant 0 : index
    %29 = vector.load %arg4[%c0_10, %c0_11] : memref<32x32xbf16, #tpu.memory_space<vmem>>, vector<32x32xbf16>
    %cst_12 = arith.constant dense<0.000000e+00> : vector<8x32xf32>
    %30 = tpu.matmul %28, %29, %cst_12 {dimension_numbers = #tpu.dot_dimension_numbers<[1], [0], [0], [1], [0, 0, 1, 1], [], []>} : vector<8x32xbf16>, vector<32x32xbf16>, vector<8x32xf32> -> vector<8x32xf32>
    %c0_13 = arith.constant 0 : index
    %c0_14 = arith.constant 0 : index
    %31 = vector.load %arg5[%c0_13, %c0_14] : memref<1x32xf32, #tpu.memory_space<vmem>>, vector<1x32xf32>
    %32 = vector.broadcast %31 : vector<1x32xf32> to vector<8x32xf32>
    %33 = arith.addf %30, %32 : vector<8x32xf32>
    %cst_15 = arith.constant 0.000000e+00 : f32
    %34 = vector.broadcast %cst_15 : f32 to vector<8x32xf32>
    %35 = arith.maximumf %33, %34 : vector<8x32xf32>
    %c0_16 = arith.constant 0 : index
    %c0_17 = arith.constant 0 : index
    %c0_18 = arith.constant 0 : index
    %36 = vector.load %arg6[%c0_16, %c0_17, %c0_18] : memref<1x8x32xf32, #tpu.memory_space<vmem>>, vector<1x8x32xf32>
    %37 = vector.shape_cast %36 : vector<1x8x32xf32> to vector<8x32xf32>
    %38 = vector.shape_cast %35 : vector<8x32xf32> to vector<1x8x32xf32>
    tpu.vector_store %arg6[%c0_16, %c0_17, %c0_18], %38 {strides = array<i32>} : memref<1x8x32xf32, #tpu.memory_space<vmem>>, vector<1x8x32xf32>,
    return
  }
  func.func @transform_0(%arg0: i32) -> (i32, i32, i32) {
    %c0_i32 = arith.constant 0 : i32
    %c0_i32_0 = arith.constant 0 : i32
    %c0_i32_1 = arith.constant 0 : i32
    return %arg0, %c0_i32, %c0_i32_0 : i32, i32, i32
  }
  func.func @transform_1(%arg0: i32) -> (i32, i32) {
    %c0_i32 = arith.constant 0 : i32
    %c0_i32_0 = arith.constant 0 : i32
    %c0_i32_1 = arith.constant 0 : i32
    return %c0_i32, %c0_i32_0 : i32, i32
  }
  func.func @transform_2(%arg0: i32) -> (i32, i32) {
    %c0_i32 = arith.constant 0 : i32
    %c0_i32_0 = arith.constant 0 : i32
    %c0_i32_1 = arith.constant 0 : i32
    return %c0_i32, %c0_i32_0 : i32, i32
  }
  func.func @transform_3(%arg0: i32) -> (i32, i32) {
    %c0_i32 = arith.constant 0 : i32
    %c0_i32_0 = arith.constant 0 : i32
    %c0_i32_1 = arith.constant 0 : i32
    return %c0_i32, %c0_i32_0 : i32, i32
  }
  func.func @transform_4(%arg0: i32) -> (i32, i32) {
    %c0_i32 = arith.constant 0 : i32
    %c0_i32_0 = arith.constant 0 : i32
    %c0_i32_1 = arith.constant 0 : i32
    return %c0_i32, %c0_i32_0 : i32, i32
  }
  func.func @transform_5(%arg0: i32) -> (i32, i32, i32) {
    %c0_i32 = arith.constant 0 : i32
    %c0_i32_0 = arith.constant 0 : i32
    %c0_i32_1 = arith.constant 0 : i32
    return %arg0, %c0_i32, %c0_i32_0 : i32, i32, i32
  }
}

</mosaic_0001>

<llo_original>
// kernel: residual_self_attention.1
$region0: #{residual_self_attention.1}
  #allocation0 [shape = 'u32[]', space=smem, size = 0x4, offset = 0x4, fixed_abs, tag = 'smem constant byte address 0x4 - core index']
  #allocation1 [shape = 'u32[72,128]{1,0:T(1,128)}', space=vmem, size = 0x9000, scoped, tag = 'internal scratch']
  %s0 = inlined_call_operand.hbm [shape: f32[2,8,32], index: 0, kind: input, shape index: {}]
  %s1 = inlined_call_operand.hbm [shape: bf16[32,96], index: 1, kind: input, shape index: {}]
  %s2 = inlined_call_operand.vmem [shape: f32[1,96], index: 2, kind: input, shape index: {}]
  %s3 = inlined_call_operand.hbm [shape: bf16[32,32], index: 3, kind: input, shape index: {}]
  %s4 = inlined_call_operand.vmem [shape: f32[1,32], index: 4, kind: input, shape index: {}]
  %s5 = inlined_call_operand.hbm [shape: f32[2,8,32], index: 5, kind: output, shape index: {}]
  %s6 = sld [smem:[#allocation0]]
  $region65: #{residual_self_attention.1} parent=0
    _
  %s8 = ssub.s32 1, %s6
  %s9 = scalar_select 0, %s8, %s6
  $region1: #{residual_self_attention.1} parent=0
    #allocation2 [shape = 'u8[8192]{0}', space=vmem, size = 0x2000, scoped, tag = 'input window, operand 0']
    #allocation3 [shape = 's32[2]{0}', space=sflag, size = 0x8, scoped, tag = 'scoped memory for residual_self_attention.1']
    #allocation4 [shape = 's32[2]{0}', space=sflag, size = 0x8, scoped, tag = 'scoped memory for residual_self_attention.1']
    #allocation5 [shape = 'u8[8192]{0}', space=vmem, size = 0x2000, scoped, tag = 'input window, operand 1, single buffered']
    #allocation6 [shape = 's32[1]{0}', space=sflag, size = 0x4, scoped, tag = 'scoped memory for residual_self_attention.1']
    #allocation7 [shape = 'u8[8192]{0}', space=vmem, size = 0x2000, scoped, tag = 'input window, operand 3, single buffered']
    #allocation8 [shape = 'u8[8192]{0}', space=vmem, size = 0x2000, scoped, tag = 'output window, operand 0']
    %10 = vsyncpa [#allocation3], 0
    %s11 = scalar_lea.sflag [#allocation3], 1
    %12 = vsyncpa %s11, 0
    %13 = vsyncpa [#allocation6], 0
    %14 = vsyncpa [#allocation4], 0
    %s15 = scalar_lea.sflag [#allocation4], 1
    %16 = vsyncpa %s15, 0
    loop: start=0, step=1, limit=4
    $region2: #{residual_self_attention.1} parent=1 // loop_pre_header
      _
    $region3: #{residual_self_attention.1} parent=1 // loop_header
      %s18 = sphi 0, %s22
      %p19 = scmp.ge.s32.totalorder %s18, 4
      %s28 = sphi 0, %s30
      %s31 = sphi 0, %s28
      %s32 = sphi 0, %s31
      %s48 = sphi 0, %s32
      %s52 = sphi 0, %s52
      %s54 = sphi 0, %s52
      %s55 = sphi 0, %s54
      %s69 = sphi 0, %s55
      %s73 = sphi 0, %s73
      %s75 = sphi 0, %s73
      %s76 = sphi 0, %s75
      %s90 = sphi 0, %s76
      %s94 = sphi 0, %s94
      %s96 = sphi 0, %s94
      %s97 = sphi 0, %s96
      %s111 = sphi 0, %s97
      %s115 = sphi 0, %s115
      %s117 = sphi 0, %s115
      %s118 = sphi 0, %s117
      %s132 = sphi 0, %s118
      %s138 = sphi 0, %s140
      %s141 = sphi 0, %s138
      %s142 = sphi 0, %s141
      %s158 = sphi 0, %s142
    $region4: #{residual_self_attention.1} parent=1 // loop_header_branch
      %21 = sbr.rel (%p19) target = $region8
    $region5: #{residual_self_attention.1} parent=1 // loop_body
      %s23 = ssub.s32 %s18, 1
      %s24 = ssub.s32 %s18, 2
      %s25 = sadd.s32 %s18, 1
      %s26 = ssub.s32 %s18, %s25
      %p27 = scmp.eq.s32.totalorder %s26, 0
      %s29 = sadd.s32 %s28, 1
      %s30 = scalar_select %p27, %s28, %s29
      %p33 = pneg %p27
      %p34 = scmp.eq.s32.totalorder %s18, 1
      %p35 = por %p33, %p34
      %p36 = scmp.ne.s32.totalorder %s28, %s31
      %p37 = scmp.eq.s32.totalorder %s18, 0
      %p38 = por %p36, %p37
      %p39 = scmp.ne.s32.totalorder %s28, %s31
      %p40 = scmp.eq.s32.totalorder %s23, 1
      %p41 = por %p39, %p40
      %p42 = scmp.ne.s32.totalorder %s31, %s32
      %p43 = scmp.eq.s32.totalorder %s23, 0
      %p44 = por %p42, %p43
      %p45 = scmp.ne.s32.totalorder %s31, %s32
      %p46 = scmp.eq.s32.totalorder %s24, 1
      %p47 = por %p45, %p46
      %p49 = scmp.ne.s32.totalorder %s32, %s48
      %p50 = scmp.eq.s32.totalorder %s24, 0
      %p51 = por %p49, %p50
      %s53 = sadd.s32 %s52, 1
      %p56 = scmp.eq.s32.totalorder %s18, 1
      %p57 = scmp.ne.s32.totalorder %s52, %s54
      %p58 = scmp.eq.s32.totalorder %s18, 0
      %p59 = por %p57, %p58
      %p60 = scmp.ne.s32.totalorder %s52, %s54
      %p61 = scmp.eq.s32.totalorder %s23, 1
      %p62 = por %p60, %p61
      %p63 = scmp.ne.s32.totalorder %s54, %s55
      %p64 = scmp.eq.s32.totalorder %s23, 0
      %p65 = por %p63, %p64
      %p66 = scmp.ne.s32.totalorder %s54, %s55
      %p67 = scmp.eq.s32.totalorder %s24, 1
      %p68 = por %p66, %p67
      %p70 = scmp.ne.s32.totalorder %s55, %s69
      %p71 = scmp.eq.s32.totalorder %s24, 0
      %p72 = por %p70, %p71
      %s74 = sadd.s32 %s73, 1
      %p77 = scmp.eq.s32.totalorder %s18, 1
      %p78 = scmp.ne.s32.totalorder %s73, %s75
      %p79 = scmp.eq.s32.totalorder %s18, 0
      %p80 = por %p78, %p79
      %p81 = scmp.ne.s32.totalorder %s73, %s75
      %p82 = scmp.eq.s32.totalorder %s23, 1
      %p83 = por %p81, %p82
      %p84 = scmp.ne.s32.totalorder %s75, %s76
      %p85 = scmp.eq.s32.totalorder %s23, 0
      %p86 = por %p84, %p85
      %p87 = scmp.ne.s32.totalorder %s75, %s76
      %p88 = scmp.eq.s32.totalorder %s24, 1
      %p89 = por %p87, %p88
      %p91 = scmp.ne.s32.totalorder %s76, %s90
      %p92 = scmp.eq.s32.totalorder %s24, 0
      %p93 = por %p91, %p92
      %s95 = sadd.s32 %s94, 1
      %p98 = scmp.eq.s32.totalorder %s18, 1
      %p99 = scmp.ne.s32.totalorder %s94, %s96
      %p100 = scmp.eq.s32.totalorder %s18, 0
      %p101 = por %p99, %p100
      %p102 = scmp.ne.s32.totalorder %s94, %s96
      %p103 = scmp.eq.s32.totalorder %s23, 1
      %p104 = por %p102, %p103
      %p105 = scmp.ne.s32.totalorder %s96, %s97
      %p106 = scmp.eq.s32.totalorder %s23, 0
      %p107 = por %p105, %p106
      %p108 = scmp.ne.s32.totalorder %s96, %s97
      %p109 = scmp.eq.s32.totalorder %s24, 1
      %p110 = por %p108, %p109
      %p112 = scmp.ne.s32.totalorder %s97, %s111
      %p113 = scmp.eq.s32.totalorder %s24, 0
      %p114 = por %p112, %p113
      %s116 = sadd.s32 %s115, 1
      %p119 = scmp.eq.s32.totalorder %s18, 1
      %p120 = scmp.ne.s32.totalorder %s115, %s117
      %p121 = scmp.eq.s32.totalorder %s18, 0
      %p122 = por %p120, %p121
      %p123 = scmp.ne.s32.totalorder %s115, %s117
      %p124 = scmp.eq.s32.totalorder %s23, 1
      %p125 = por %p123, %p124
      %p126 = scmp.ne.s32.totalorder %s117, %s118
      %p127 = scmp.eq.s32.totalorder %s23, 0
      %p128 = por %p126, %p127
      %p129 = scmp.ne.s32.totalorder %s117, %s118
      %p130 = scmp.eq.s32.totalorder %s24, 1
      %p131 = por %p129, %p130
      %p133 = scmp.ne.s32.totalorder %s118, %s132
      %p134 = scmp.eq.s32.totalorder %s24, 0
      %p135 = por %p133, %p134
      %s136 = ssub.s32 %s18, %s25
      %p137 = scmp.eq.s32.totalorder %s136, 0
      %s139 = sadd.s32 %s138, 1
      %s140 = scalar_select %p137, %s138, %s139
      %p143 = pneg %p137
      %p144 = scmp.eq.s32.totalorder %s18, 1
      %p145 = por %p143, %p144
      %p146 = scmp.ne.s32.totalorder %s138, %s141
      %p147 = scmp.eq.s32.totalorder %s18, 0
      %p148 = por %p146, %p147
      %p149 = scmp.ne.s32.totalorder %s138, %s141
      %p150 = scmp.eq.s32.totalorder %s23, 1
      %p151 = por %p149, %p150
      %p152 = scmp.ne.s32.totalorder %s141, %s142
      %p153 = scmp.eq.s32.totalorder %s23, 0
      %p154 = por %p152, %p153
      %p155 = scmp.ne.s32.totalorder %s141, %s142
      %p156 = scmp.eq.s32.totalorder %s24, 1
      %p157 = por %p155, %p156
      %p159 = scmp.ne.s32.totalorder %s142, %s158
      %p160 = scmp.eq.s32.totalorder %s24, 0
      %p161 = por %p159, %p160
      %p162 = scmp.le.s32.totalorder 1, %s18
      %p163 = scmp.lt.s32.totalorder %s18, 3
      %p164 = pnand %p162, %p163
      %p165 = pneg %p164
      // Predicated region
      $region9: #{residual_self_attention.1} parent=5 // pred_check
        _
      $region10: #{residual_self_attention.1} parent=5 // pred_check_branch
        %167 = sbr.rel (%p164) target = $region12
      $region11: #{residual_self_attention.1} parent=5 // pred_region
        %s168 = ssub.s32 %s18, 1
        // Predicated region
        $region13: #{residual_self_attention.1} parent=11 // pred_check
          %p169 = pneg %p65
        $region14: #{residual_self_attention.1} parent=11 // pred_check_branch
          %171 = sbr.rel (%p169) target = $region16
        $region15: #{residual_self_attention.1} parent=11 // pred_region
          %173 = vsyncadd [#allocation6], 0
          %s174 = sshll.u32 %s1, 4
          %s175 = int_to_ptr.hbm [resolvable:$true] %s174
          %s176 = sshll.u32 [#allocation5], 4
          %s177 = int_to_ptr.vmem [resolvable:$true] %s176
          %182 = dma.hbm_to_vmem [thread:$0]  %s175, 256, %s177, [#allocation6], 64, 64, 4
        $region16: #{residual_self_attention.1} parent=11 // pred_fallthru
          _
        // Predicated region
        $region17: #{residual_self_attention.1} parent=11 // pred_check
          %p183 = pneg %p86
        $region18: #{residual_self_attention.1} parent=11 // pred_check_branch
          %185 = sbr.rel (%p183) target = $region20
        $region19: #{residual_self_attention.1} parent=11 // pred_region
          _
        $region20: #{residual_self_attention.1} parent=11 // pred_fallthru
          _
        // Predicated region
        $region21: #{residual_self_attention.1} parent=11 // pred_check
          %p186 = pneg %p107
        $region22: #{residual_self_attention.1} parent=11 // pred_check_branch
          %188 = sbr.rel (%p186) target = $region24
        $region23: #{residual_self_attention.1} parent=11 // pred_region
          %190 = vsyncadd [#allocation6], 0
          %s191 = sshll.u32 %s3, 4
          %s192 = int_to_ptr.hbm [resolvable:$true] %s191
          %s193 = sshll.u32 [#allocation7], 4
          %s194 = int_to_ptr.vmem [resolvable:$true] %s193
          %199 = dma.hbm_to_vmem [thread:$0]  %s192, 256, %s194, [#allocation6], 64, 64, 4
        $region24: #{residual_self_attention.1} parent=11 // pred_fallthru
          _
        // Predicated region
        $region25: #{residual_self_attention.1} parent=11 // pred_check
          %p200 = pneg %p128
        $region26: #{residual_self_attention.1} parent=11 // pred_check_branch
          %202 = sbr.rel (%p200) target = $region28
        $region27: #{residual_self_attention.1} parent=11 // pred_region
          _
        $region28: #{residual_self_attention.1} parent=11 // pred_fallthru
          _
      $region12: #{residual_self_attention.1} parent=5 // pred_fallthru
        _
      %p203 = scmp.lt.s32.totalorder %s18, 2
      // Predicated region
      $region29: #{residual_self_attention.1} parent=5 // pred_check
        %p204 = pneg %p203
      $region30: #{residual_self_attention.1} parent=5 // pred_check_branch
        %206 = sbr.rel (%p204) target = $region32
      $region31: #{residual_self_attention.1} parent=5 // pred_region
        // Predicated region
        $region33: #{residual_self_attention.1} parent=31 // pred_check
          %p207 = pneg %p38
        $region34: #{residual_self_attention.1} parent=31 // pred_check_branch
          %209 = sbr.rel (%p207) target = $region36
        $region35: #{residual_self_attention.1} parent=31 // pred_region
          %s210 = sand.u32 %s28, 1
          %s211 = scalar_lea.sflag [#allocation3], %s210
          %s212 = sand.u32 %s28, 1
          %s213 = smul.addr %s212, 8
          %s214 = scalar_lea.vmem [#allocation2], %s213
          %216 = vsyncadd %s211, 0
          %s217 = smul.addr %s18, 8
          %s218 = scalar_lea.hbm %s0, %s217
          %s220 = sshll.u32 %s218, 4
          %s221 = int_to_ptr.hbm [resolvable:$true] %s220
          %s222 = sshll.u32 %s214, 4
          %s223 = int_to_ptr.vmem [resolvable:$true] %s222
          %225 = dma.hbm_to_vmem [thread:$0]  %s221, 128, %s223, %s211
        $region36: #{residual_self_attention.1} parent=31 // pred_fallthru
          _
      $region32: #{residual_self_attention.1} parent=5 // pred_fallthru
        _
      %p226 = scmp.le.s32.totalorder 1, %s18
      %p227 = scmp.lt.s32.totalorder %s18, 3
      %p228 = pnand %p226, %p227
      %p229 = pneg %p228
      // Predicated region
      $region37: #{residual_self_attention.1} parent=5 // pred_check
        _
      $region38: #{residual_self_attention.1} parent=5 // pred_check_branch
        %231 = sbr.rel (%p228) target = $region40
      $region39: #{residual_self_attention.1} parent=5 // pred_region
        %s232 = ssub.s32 %s18, 1
        %s233 = sand.u32 %s31, 1
        %s234 = scalar_lea.sflag [#allocation3], %s233
        %s235 = sand.u32 %s31, 1
        %s236 = smul.addr %s235, 8
        %s237 = scalar_lea.vmem [#allocation2], %s236
        // Predicated region
        $region41: #{residual_self_attention.1} parent=39 // pred_check
          %p238 = pneg %p44
        $region42: #{residual_self_attention.1} parent=39 // pred_check_branch
          %240 = sbr.rel (%p238) target = $region44
        $region43: #{residual_self_attention.1} parent=39 // pred_region
          %242 = dma.done %s234, 128
        $region44: #{residual_self_attention.1} parent=39 // pred_fallthru
          _
        // Predicated region
        $region45: #{residual_self_attention.1} parent=39 // pred_check
          %p243 = pneg %p65
        $region46: #{residual_self_attention.1} parent=39 // pred_check_branch
          %245 = sbr.rel (%p243) target = $region48
        $region47: #{residual_self_attention.1} parent=39 // pred_region
          %247 = dma.done [#allocation6], 256
        $region48: #{residual_self_attention.1} parent=39 // pred_fallthru
          _
        // Predicated region
        $region49: #{residual_self_attention.1} parent=39 // pred_check
          %p248 = pneg %p107
        $region50: #{residual_self_attention.1} parent=39 // pred_check_branch
          %250 = sbr.rel (%p248) target = $region52
        $region51: #{residual_self_attention.1} parent=39 // pred_region
          %252 = dma.done [#allocation6], 256
        $region52: #{residual_self_attention.1} parent=39 // pred_fallthru
          _
        %s253 = sand.u32 %s31, 1
        %s254 = scalar_lea.sflag [#allocation3], %s253
        %s255 = sand.u32 %s31, 1
        %s256 = smul.addr %s255, 8
        %s257 = scalar_lea.vmem [#allocation2], %s256
        %p258 = pneg %p44
        %p259 = pneg %p41
        %p260 = pneg %p65
        %p261 = pneg %p62
        %p262 = pneg %p86
        %p263 = pneg %p83
        %p264 = pneg %p107
        %p265 = pneg %p104
        %p266 = pneg %p128
        %p267 = pneg %p125
        %p268 = pneg %p154
        %p269 = pneg %p151
        %s270 = sand.u32 %s141, 1
        %s271 = scalar_lea.sflag [#allocation4], %s270
        %s272 = sand.u32 %s141, 1
        %s273 = smul.addr %s272, 8
        %s274 = scalar_lea.vmem [#allocation8], %s273
        %v276 = vld [vmem:[%s237] sm:$0xff]
        %v277 = vpack.c.bf16 %v276, %v276
        %v278 = vld [vmem:[#allocation5] sm:$0xf]
        %v279 = vld [vmem:[#allocation5 + $0x4] sm:$0xf]
        %v280 = vld [vmem:[#allocation5 + $0x8] sm:$0xf]
        %v281 = vld [vmem:[#allocation5 + $0xc] sm:$0xf]
        %v282 = vld [vmem:[%s2] sm:$0x1]
        %v284 = vperm.slane %v282, 0
        %v290 = vunpack.c.l.b16 %v278
        %v291 = vunpack.c.l.b16 %v279
        %v292 = vunpack.c.l.b16 %v280
        %v293 = vunpack.c.l.b16 %v281
        %v294 = vpack.c.b16 %v291, %v290
        %v295 = vpack.c.b16 %v293, %v292
        %vm298 = vcmask 261120
        %v300 = vsel %vm298, %v277, 0
        %302 = vmatpush.bf16.msra.mxu0 0
        %303 = vmatpush.bf16.msra.mxu0 0
        %304 = vmatpush.bf16.msra.mxu0 0
        %305 = vmatpush.bf16.msra.mxu0 0
        %306 = vmatpush.bf16.msra.mxu0 0
        %307 = vmatpush.bf16.msra.mxu0 0
        %308 = vmatpush.bf16.msra.mxu0 %v295
        %309 = vmatpush.bf16.msra.mxu0 %v294
        %310 = vmatmul.bf16.gmra.mxu0 %v300
        %v311 = vpop.f32.mrf.mxu0
        %v312 = vadd.f32 %v284, %v311
        %v313 = vpop.f32.mrf.mxu0
        %314 = vdwg.mxu0
        %v315 = vpack.c.bf16 %v312, %v312
        %317 = vrot.lane.b32.xlu0 %v315, 96
        %v318 = vpop.permute.xlu0 %317
        %v320 = vsel %vm298, %v315, 0
        %v323 = vsel %vm298, %v318, 0
        %325 = vmatpush.bf16.xpose.msra.mxu0 0
        %326 = vmatpush.bf16.xpose.msra.mxu0 0
        %327 = vmatpush.bf16.xpose.msra.mxu0 0
        %328 = vmatpush.bf16.xpose.msra.mxu0 0
        %329 = vmatpush.bf16.xpose.msra.mxu0 0
        %330 = vmatpush.bf16.xpose.msra.mxu0 0
        %331 = vmatpush.bf16.xpose.msra.mxu0 0
        %332 = vmatpush.bf16.xpose.msra.mxu0 %v323
        %333 = vmatmul.bf16.gmra.mxu0 %v320
        %v334 = vpop.f32.mrf.mxu0
        %v335 = vadd.f32 0.0, %v334
        %v336 = vpop.f32.mrf.mxu0
        %337 = vdwg.mxu0
        %vm338 = vcmask 64512
        %v339 = vsel %vm338, %v335, -inf
        %340 = vmax.xlane.f32.xlu0 %v339
        %v341 = vpop.xlane.xlu0 %340
        %v342 = vsub.f32 %v335, %v341
        %v343 = vmul.f32 %v342, 1.442695
        %v344 = vpow.pop %v343
        %v345 = vsel %vm338, %v344, 0.0
        %346 = vadd.xlane.f32.xlu0 %v345
        %v347 = vpop.xlane.xlu0 %346
        %v348 = vrcp.pop %v347
        %v349 = vmul.f32 %v344, %v348
        %v350 = vpack.c.bf16 %v349, %v349
        %351 = vrot.lane.b32.xlu0 %v315, 64
        %v352 = vpop.permute.xlu0 %351
        %v354 = vsel %vm338, %v350, 0
        %vm356 = vcmask 1043456
        %v358 = vsel %vm356, %v352, 0
        %360 = vmatpush.bf16.msra.mxu0 0
        %361 = vmatpush.bf16.msra.mxu0 0
        %362 = vmatpush.bf16.msra.mxu0 0
        %363 = vmatpush.bf16.msra.mxu0 0
        %364 = vmatpush.bf16.msra.mxu0 0
        %365 = vmatpush.bf16.msra.mxu0 0
        %366 = vmatpush.bf16.msra.mxu0 0
        %367 = vmatpush.bf16.msra.mxu0 %v358
        %368 = vmatmul.bf16.gmra.mxu0 %v354
        %v369 = vpop.f32.mrf.mxu0
        %v370 = vadd.f32 %v276, %v369
        %v371 = vpop.f32.mrf.mxu0
        %372 = vdwg.mxu0
        %v373 = vpack.c.bf16 %v370, %v370
        %v374 = vld [vmem:[#allocation7] sm:$0xf]
        %v375 = vld [vmem:[#allocation7 + $0x4] sm:$0xf]
        %v376 = vld [vmem:[#allocation7 + $0x8] sm:$0xf]
        %v377 = vld [vmem:[#allocation7 + $0xc] sm:$0xf]
        %v378 = vld [vmem:[%s4] sm:$0x1]
        %v380 = vperm.slane %v378, 0
        %v386 = vunpack.c.l.b16 %v374
        %v387 = vunpack.c.l.b16 %v375
        %v388 = vunpack.c.l.b16 %v376
        %v389 = vunpack.c.l.b16 %v377
        %v390 = vpack.c.b16 %v387, %v386
        %v391 = vpack.c.b16 %v389, %v388
        %v395 = vsel %vm298, %v373, 0
        %397 = vmatpush.bf16.msra.mxu0 0
        %398 = vmatpush.bf16.msra.mxu0 0
        %399 = vmatpush.bf16.msra.mxu0 0
        %400 = vmatpush.bf16.msra.mxu0 0
        %401 = vmatpush.bf16.msra.mxu0 0
        %402 = vmatpush.bf16.msra.mxu0 0
        %403 = vmatpush.bf16.msra.mxu0 %v391
        %404 = vmatpush.bf16.msra.mxu0 %v390
        %405 = vmatmul.bf16.gmra.mxu0 %v395
        %v406 = vpop.f32.mrf.mxu0
        %v407 = vadd.f32 %v380, %v406
        %v408 = vpop.f32.mrf.mxu0
        %409 = vdwg.mxu0
        %v410 = vmax.f32 %v407, 0.0
        %411 = vst.msk [vmem:[%s274] sm:$0xff] %vm298, %v410
        %s412 = sand.u32 %s141, 1
        %s413 = scalar_lea.sflag [#allocation4], %s412
        %s414 = sand.u32 %s141, 1
        %s415 = smul.addr %s414, 8
        %s416 = scalar_lea.vmem [#allocation8], %s415
        // Predicated region
        $region53: #{residual_self_attention.1} parent=39 // pred_check
          %p417 = pneg %p151
        $region54: #{residual_self_attention.1} parent=39 // pred_check_branch
          %419 = sbr.rel (%p417) target = $region56
        $region55: #{residual_self_attention.1} parent=39 // pred_region
          %421 = vsyncadd %s413, 0
          %s422 = smul.addr %s23, 8
          %s423 = scalar_lea.hbm %s5, %s422
          %s425 = sshll.u32 %s416, 4
          %s426 = int_to_ptr.vmem [resolvable:$true] %s425
          %s427 = sshll.u32 %s423, 4
          %s428 = int_to_ptr.hbm [resolvable:$true] %s427
          %430 = dma.vmem_to_hbm [thread:$0]  %s426, 128, %s428, %s413
        $region56: #{residual_self_attention.1} parent=39 // pred_fallthru
          _
      $region40: #{residual_self_attention.1} parent=5 // pred_fallthru
        _
      %p431 = scmp.le.s32.totalorder 2, %s18
      // Predicated region
      $region57: #{residual_self_attention.1} parent=5 // pred_check
        %p432 = pneg %p431
      $region58: #{residual_self_attention.1} parent=5 // pred_check_branch
        %434 = sbr.rel (%p432) target = $region60
      $region59: #{residual_self_attention.1} parent=5 // pred_region
        %s435 = ssub.s32 %s18, 2
        // Predicated region
        $region61: #{residual_self_attention.1} parent=59 // pred_check
          %p436 = pneg %p157
        $region62: #{residual_self_attention.1} parent=59 // pred_check_branch
          %438 = sbr.rel (%p436) target = $region64
        $region63: #{residual_self_attention.1} parent=59 // pred_region
          %s439 = sand.u32 %s142, 1
          %s440 = scalar_lea.sflag [#allocation4], %s439
          %s441 = sand.u32 %s142, 1
          %s442 = smul.addr %s441, 8
          %s443 = scalar_lea.vmem [#allocation8], %s442
          %445 = dma.done %s440, 128
        $region64: #{residual_self_attention.1} parent=59 // pred_fallthru
          _
      $region60: #{residual_self_attention.1} parent=5 // pred_fallthru
        _
    $region6: #{residual_self_attention.1} parent=1 // loop_footer
      %s22 = sadd.s32 1, %s18
    $region7: #{residual_self_attention.1} parent=1 // loop_footer_branch
      %17 = sbr.rel target = $region3
    $region8: #{residual_self_attention.1} parent=1 // loop_exit
      _
    %446 = vsyncpa [#allocation3], 1
    %s447 = scalar_lea.sflag [#allocation3], 1
    %448 = vsyncpa %s447, 1
    %449 = vsyncpa [#allocation6], 1
    %450 = vsyncpa [#allocation4], 1
    %s451 = scalar_lea.sflag [#allocation4], 1
    %452 = vsyncpa %s451, 1

</llo_original>
